<compile_context>
chip_gen: v6e
topology: v6e:2x2x1
jax: 0.10.0
libtpu: 0.0.40
codegen_flags: <defaults>
</compile_context>

<pallas_src>
import functools
import math

import jax
import jax.numpy as jnp
from jax.experimental import pallas as pl
from jax.experimental.pallas import tpu as pltpu


# --------------------------------------------------------------------------------------
# helpers: lane-dense tile selection (multiple of 128, VMEM budgeted incl. double buffers)
# --------------------------------------------------------------------------------------
def _round_up(x, m):
    return ((x + m - 1) // m) * m


def _cdiv(a, b):
    return (a + b - 1) // b


def _pick_tile(hw, bytes_per_col, budget, cap=1024):
    """Largest multiple of 128 (<= cap) whose per-step working set fits the budget."""
    t = min(cap, _round_up(hw, 128))
    t = max(128, (t // 128) * 128)
    while t > 128 and bytes_per_col * t > budget:
        t -= 128
    return t


# --------------------------------------------------------------------------------------
# Kernel 1 (fast path & attention of slow path): fused communication-mask + per-pixel
# scaled-dot-product attention over the cav axis, streamed cav-row by cav-row with an
# online softmax.  Grid = (lane_tiles, Ncav); scalar prefetch carries per-row batch id /
# first(=ego) / last flags.  Output block index depends on the prefetched batch table.
# --------------------------------------------------------------------------------------
def _fused_attn_kernel(bat_ref, first_ref, last_ref, *refs,
                       thre, inv_sqrt_dim, apply_mask):
    if apply_mask:
        psm_ref, x_ref, o_ref, ego_ref, m_ref, l_ref, acc_ref = refs
    else:
        x_ref, o_ref, ego_ref, m_ref, l_ref, acc_ref = refs

    n = pl.program_id(1)                                      # cav row index
    is_first = first_ref[n] == 1                              # first cav of its batch = ego
    is_last = last_ref[n] == 1

    f = x_ref[...].astype(jnp.float32)                        # (C, tile)
    if apply_mask:
        conf = jax.nn.sigmoid(psm_ref[...].astype(jnp.float32))   # (A, tile)
        conf = jnp.max(conf, axis=0, keepdims=True)                # (1, tile)
        raw = (conf > thre).astype(jnp.float32)
        ego_flag = (first_ref[n] == 1).astype(jnp.float32)         # ego keeps every pixel
        f = f * jnp.maximum(raw, ego_flag)

    @pl.when(is_first)
    def _():                                                  # init online-softmax state
        ego_ref[...] = f                                      # ego row is the query
        m_ref[...] = jnp.full(m_ref.shape, -1e30, jnp.float32)
        l_ref[...] = jnp.zeros(l_ref.shape, jnp.float32)
        acc_ref[...] = jnp.zeros(acc_ref.shape, jnp.float32)

    s = jnp.sum(f * ego_ref[...], axis=0, keepdims=True) * inv_sqrt_dim   # (1, tile)
    m_new = jnp.maximum(m_ref[...], s)
    alpha = jnp.exp(m_ref[...] - m_new)
    p = jnp.exp(s - m_new)
    l_ref[...] = alpha * l_ref[...] + p
    acc_ref[...] = alpha * acc_ref[...] + p * f
    m_ref[...] = m_new

    @pl.when(is_last)
    def _():                                                  # finalize this batch's tile
        o_ref[...] = (acc_ref[...] *
                      pl.reciprocal(l_ref[...], approx=True)).astype(o_ref.dtype)


def fused_mask_attention(feats, psm, bat, first, last, *, num_batches, thre, apply_mask):
    """feats: (Ncav, C, HW); psm: (Ncav, A, HW) or None; returns fused (B, C, HW) f32."""
    Ncav, C, HW = feats.shape
    A = psm.shape[1] if apply_mask else 0

    # per lane-column bytes: double-buffered inputs + double-buffered output + scratch
    bytes_per_col = 4 * (2 * (C + A) + 2 * C + 2 * C + 4)
    tile = _pick_tile(HW, bytes_per_col, budget=8 * 1024 * 1024, cap=1024)
    T = _cdiv(HW, tile)
    vmem_limit = int(bytes_per_col * tile + (6 << 20))        # actual need + small margin

    in_specs, inputs = [], []
    if apply_mask:
        in_specs.append(pl.BlockSpec((pl.Squeezed(), A, tile),
                                     lambda t, n, *_: (n, 0, t)))
        inputs.append(psm)
    in_specs.append(pl.BlockSpec((pl.Squeezed(), C, tile),
                                 lambda t, n, *_: (n, 0, t)))
    inputs.append(feats)

    kernel = functools.partial(_fused_attn_kernel, thre=thre,
                               inv_sqrt_dim=1.0 / math.sqrt(C), apply_mask=apply_mask)
    return pl.pallas_call(
        kernel,
        out_shape=jax.ShapeDtypeStruct((num_batches, C, HW), jnp.float32),
        grid_spec=pltpu.PrefetchScalarGridSpec(
            num_scalar_prefetch=3,
            grid=(T, Ncav),                                   # cav (reduction) axis last
            in_specs=in_specs,
            out_specs=pl.BlockSpec((pl.Squeezed(), C, tile),
                                   lambda t, n, bat_ref, *_: (bat_ref[n], 0, t)),
            scratch_shapes=[pltpu.VMEM((C, tile), jnp.float32),   # ego query
                            pltpu.VMEM((1, tile), jnp.float32),   # running max
                            pltpu.VMEM((1, tile), jnp.float32),   # running denominator
                            pltpu.VMEM((C, tile), jnp.float32)]), # running numerator
        compiler_params=pltpu.CompilerParams(
            dimension_semantics=("parallel", "arbitrary"),
            vmem_limit_bytes=vmem_limit),
    )(bat, first, last, *inputs)


# --------------------------------------------------------------------------------------
# Kernel 2 (slow path only): Communication mask applied to the features so they can be
# warped by STTF before attention.  Pure per-block computation -> both axes "parallel".
# --------------------------------------------------------------------------------------
def _comm_mask_kernel(is_ego_ref, psm_ref, x_ref, xo_ref, *, thre):
    n = pl.program_id(0)
    conf = jnp.max(jax.nn.sigmoid(psm_ref[...].astype(jnp.float32)),
                   axis=0, keepdims=True)                     # (1, tile)
    raw = (conf > thre).astype(jnp.float32)
    ego = (is_ego_ref[n] == 1).astype(jnp.float32)            # ego keeps every pixel
    xo_ref[...] = (x_ref[...].astype(jnp.float32) *
                   jnp.maximum(raw, ego)).astype(xo_ref.dtype)


def communication(x2, psm2, is_ego, thre):
    """x2: (Ncav, C, HW); psm2: (Ncav, A, HW); returns masked (Ncav, C, HW) f32."""
    Ncav, C, HW = x2.shape
    A = psm2.shape[1]
    bytes_per_col = 4 * (2 * (C + A) + 2 * C)                 # double-buffered in + out
    tile = _pick_tile(HW, bytes_per_col, budget=8 * 1024 * 1024, cap=2048)
    T = _cdiv(HW, tile)
    vmem_limit = int(bytes_per_col * tile + (6 << 20))

    kernel = functools.partial(_comm_mask_kernel, thre=thre)
    return pl.pallas_call(
        kernel,
        out_shape=jax.ShapeDtypeStruct((Ncav, C, HW), jnp.float32),
        grid_spec=pltpu.PrefetchScalarGridSpec(
            num_scalar_prefetch=1,
            grid=(Ncav, T),
            in_specs=[pl.BlockSpec((pl.Squeezed(), A, tile), lambda n, t, *_: (n, 0, t)),
                      pl.BlockSpec((pl.Squeezed(), C, tile), lambda n, t, *_: (n, 0, t))],
            out_specs=pl.BlockSpec((pl.Squeezed(), C, tile), lambda n, t, *_: (n, 0, t))),
        compiler_params=pltpu.CompilerParams(
            dimension_semantics=("parallel", "parallel"),
            vmem_limit_bytes=vmem_limit),
    )(is_ego, psm2, x2)


# --------------------------------------------------------------------------------------
# STTF fallback (non-identity correction matrices): plain-JAX bilinear warp per cav row.
# --------------------------------------------------------------------------------------
def _warp_row(src_chw, m23):
    C, H, W = src_chw.shape
    ys, xs = jnp.meshgrid(jnp.arange(H, dtype=jnp.float32),
                          jnp.arange(W, dtype=jnp.float32), indexing="ij")
    sx = m23[0, 0] * xs + m23[0, 1] * ys + m23[0, 2]
    sy = m23[1, 0] * xs + m23[1, 1] * ys + m23[1, 2]
    x0 = jnp.floor(sx); y0 = jnp.floor(sy)
    x1 = x0 + 1.0;      y1 = y0 + 1.0
    wx1 = sx - x0; wx0 = 1.0 - wx1
    wy1 = sy - y0; wy0 = 1.0 - wy1
    src_flat = src_chw.reshape(C, H * W)

    def gather(yi, xi):
        valid = (yi >= 0) & (yi <= H - 1) & (xi >= 0) & (xi <= W - 1)
        yc = jnp.clip(yi, 0, H - 1).astype(jnp.int32)
        xc = jnp.clip(xi, 0, W - 1).astype(jnp.int32)
        idx = (yc * W + xc).reshape(-1)                       # single flattened gather
        g = jnp.take(src_flat, idx, axis=1).reshape(C, H, W)
        return g * valid[None].astype(src_chw.dtype)

    return (gather(y0, x0) * (wy0 * wx0)[None] + gather(y0, x1) * (wy0 * wx1)[None]
            + gather(y1, x0) * (wy1 * wx0)[None] + gather(y1, x1) * (wy1 * wx1)[None])


def sttf_rows(x_rows, spatial_correction_matrix, record_len,
              discrete_ratio, downsample_rate):
    """Warp each non-ego cav row into the ego frame (channel-first, no (B,L,...) pad)."""
    # TODO(synk): original STTF uses kornia-style normalized affine_grid/grid_sample;
    # this is a pixel-space bilinear warp (identical for identity correction matrices).
    Ncav, C, H, W = x_rows.shape
    M4 = spatial_correction_matrix[:, :, :2, :]               # (B, L, 2, 4)
    M = jnp.stack([M4[..., 0], M4[..., 1],
                   M4[..., 3] / (discrete_ratio * downsample_rate)], axis=-1)  # (B,L,2,3)
    rows, n = [], 0
    for b, nb in enumerate(record_len):
        rows.append(x_rows[n])                                # ego stays untouched
        for l in range(1, nb):
            rows.append(_warp_row(x_rows[n + l], M[b, l]))
        n += nb
    return jnp.stack(rows, axis=0)


# --------------------------------------------------------------------------------------
# MyFusion forward (multi_scale=False, use_RTE=False)
# --------------------------------------------------------------------------------------
def my_fusion_forward(x, prior_encoding, psm_single, record_len, pairwise_t_matrix,
                      spatial_correction_matrix, *, comm_thre=0.01, discrete_ratio=0.4,
                      downsample_rate=4, max_cav=5):
    Ncav, C, H, W = x.shape
    B = pairwise_t_matrix.shape[0]
    HW = H * W
    record_len = [int(n) for n in record_len]
    assert sum(record_len) == Ncav and len(record_len) == B
    assert all(1 <= nb <= max_cav for nb in record_len)

    # prior_encoding concat/permute/slice is a numerical no-op with use_RTE=False.
    del prior_encoding
    # TODO(synk): multi_scale branch needs an external ResNet backbone / deblocks and is
    # intentionally not implemented here.

    # Static per-row tables for scalar prefetch: batch id / first(=ego) / last flags.
    bat_l, first_l, last_l = [], [], []
    for b, nb in enumerate(record_len):
        for i in range(nb):
            bat_l.append(b)
            first_l.append(1 if i == 0 else 0)
            last_l.append(1 if i == nb - 1 else 0)
    bat = jnp.asarray(bat_l, jnp.int32)
    first = jnp.asarray(first_l, jnp.int32)
    last = jnp.asarray(last_l, jnp.int32)

    # Communication rate from the tiny psm tensor (keeps the Pallas kernels free of
    # scalar side outputs so their grid axes stay megacore-parallel).
    conf = jnp.max(jax.nn.sigmoid(psm_single.astype(jnp.float32)), axis=1)   # (Ncav,H,W)
    raw_sum = jnp.sum((conf > comm_thre).astype(jnp.float32), axis=(1, 2))   # (Ncav,)
    rates, start = [], 0
    for nb in record_len:
        rates.append(jnp.sum(raw_sum[start:start + nb]) / float(nb * H * W))
        start += nb
    communication_rates = sum(rates) / B

    psm2 = psm_single.reshape(Ncav, psm_single.shape[1], HW)

    # Identity-STTF short-circuit (concrete matrices; the common proj_first case).
    eye = jnp.eye(4, dtype=spatial_correction_matrix.dtype)
    try:
        identity_sttf = bool(jnp.all(jnp.abs(spatial_correction_matrix - eye) < 1e-6))
    except jax.errors.ConcretizationTypeError:
        identity_sttf = False

    if identity_sttf:
        # Fast path: mask fused into the attention load path; masked features never
        # touch HBM, zero padded cav rows never DMAed.
        feats2 = x.reshape(Ncav, C, HW)
        fused = fused_mask_attention(feats2, psm2, bat, first, last,
                                     num_batches=B, thre=comm_thre, apply_mask=True)
    else:
        # Slow path: mask (Pallas) -> warp to ego frame (plain JAX) -> attention (Pallas).
        masked = communication(x.reshape(Ncav, C, HW), psm2, first, comm_thre)
        warped = sttf_rows(masked.reshape(Ncav, C, H, W), spatial_correction_matrix,
                           record_len, discrete_ratio, downsample_rate)
        fused = fused_mask_attention(warped.reshape(Ncav, C, HW), None, bat, first, last,
                                     num_batches=B, thre=comm_thre, apply_mask=False)

    x_fuse = fused.reshape(B, C, H, W)
    return x_fuse, communication_rates


if __name__ == "__main__":
    key = jax.random.PRNGKey(0)
    B = 2
    record_len = [2, 3]          # per-batch number of cavs
    Ncav = sum(record_len)
    C, H, W = 32, 16, 16
    A = 2                        # anchor channels of psm_single
    L = 5                        # max_cav

    k1, k2, k3 = jax.random.split(key, 3)
    x = jax.random.normal(k1, (Ncav, C, H, W), dtype=jnp.float32)
    psm_single = jax.random.normal(k2, (Ncav, A, H, W), dtype=jnp.float32)
    prior_encoding = jax.random.normal(k3, (B, L, 3, 1, 1), dtype=jnp.float32)
    pairwise_t_matrix = jnp.broadcast_to(jnp.eye(4, dtype=jnp.float32), (B, L, L, 4, 4))
    spatial_correction_matrix = jnp.broadcast_to(jnp.eye(4, dtype=jnp.float32), (B, L, 4, 4))

    # Fast path: identity correction matrices -> single fused mask+attention kernel.
    x_fuse, comm_rate = my_fusion_forward(
        x, prior_encoding, psm_single, record_len,
        pairwise_t_matrix, spatial_correction_matrix,
        comm_thre=0.01, discrete_ratio=0.4, downsample_rate=4, max_cav=L)
    jax.block_until_ready((x_fuse, comm_rate))
    assert x_fuse.shape == (B, C, H, W)
    assert jnp.isfinite(x_fuse).all() and jnp.isfinite(comm_rate)

    # Slow path: non-identity correction matrices -> communication kernel + warp +
    # attention kernel (mask applied upstream).
    shift = jnp.zeros((B, L, 4, 4), jnp.float32)
    shift = shift.at[:, 1:, 0, 3].set(1.6)      # +1 pixel x-translation after /(0.4*4)
    shift = shift.at[:, 1:, 1, 3].set(-3.2)     # -2 pixel y-translation
    scm2 = spatial_correction_matrix + shift
    x_fuse2, comm_rate2 = my_fusion_forward(
        x, prior_encoding, psm_single, record_len,
        pairwise_t_matrix, scm2,
        comm_thre=0.01, discrete_ratio=0.4, downsample_rate=4, max_cav=L)
    jax.block_until_ready((x_fuse2, comm_rate2))
    assert x_fuse2.shape == (B, C, H, W)
    assert jnp.isfinite(x_fuse2).all() and jnp.isfinite(comm_rate2)

    print("KERNEL_OK")
</pallas_src>

<mosaic_0001>
module attributes {stable_mosaic.version = 11 : i64} {
  func.func @_fused_attn_kernel(%arg0: i32, %arg1: i32, %arg2: memref<5xi32, #tpu.memory_space<smem>>, %arg3: memref<5xi32, #tpu.memory_space<smem>>, %arg4: memref<5xi32, #tpu.memory_space<smem>>, %arg5: memref<1x2x256xf32, #tpu.memory_space<vmem>>, %arg6: memref<1x32x256xf32, #tpu.memory_space<vmem>>, %arg7: memref<1x32x256xf32, #tpu.memory_space<vmem>>, %arg8: memref<32x256xf32, #tpu.memory_space<vmem>>, %arg9: memref<1x256xf32, #tpu.memory_space<vmem>>, %arg10: memref<1x256xf32, #tpu.memory_space<vmem>>, %arg11: memref<32x256xf32, #tpu.memory_space<vmem>>) attributes {dimension_semantics = [#tpu.dimension_semantics<parallel>, #tpu.dimension_semantics<arbitrary>], iteration_bounds = array<i64: 1, 5>, scalar_prefetch = 3 : i64, scratch_operands = 4 : i64, tpu.core_type = #tpu.core_type<tc>, window_params = [{transform_indices = @transform_0, window_bounds = array<i64: 1, 2, 256>}, {transform_indices = @transform_1, window_bounds = array<i64: 1, 32, 256>}, {transform_indices = @transform_2, window_bounds = array<i64: 1, 32, 256>}]} {
    %0 = arith.index_cast %arg1 : i32 to index
    %1 = memref.load %arg3[%0] : memref<5xi32, #tpu.memory_space<smem>>
    %c1_i32 = arith.constant 1 : i32
    %2 = arith.cmpi eq, %1, %c1_i32 : i32
    %3 = arith.index_cast %arg1 : i32 to index
    %4 = memref.load %arg4[%3] : memref<5xi32, #tpu.memory_space<smem>>
    %c1_i32_0 = arith.constant 1 : i32
    %5 = arith.cmpi eq, %4, %c1_i32_0 : i32
    %c0 = arith.constant 0 : index
    %c0_1 = arith.constant 0 : index
    %c0_2 = arith.constant 0 : index
    %6 = vector.load %arg6[%c0, %c0_1, %c0_2] : memref<1x32x256xf32, #tpu.memory_space<vmem>>, vector<1x32x256xf32>
    %7 = vector.shape_cast %6 : vector<1x32x256xf32> to vector<32x256xf32>
    %c0_3 = arith.constant 0 : index
    %c0_4 = arith.constant 0 : index
    %c0_5 = arith.constant 0 : index
    %8 = vector.load %arg5[%c0_3, %c0_4, %c0_5] : memref<1x2x256xf32, #tpu.memory_space<vmem>>, vector<1x2x256xf32>
    %9 = vector.shape_cast %8 : vector<1x2x256xf32> to vector<2x256xf32>
    %10 = arith.negf %9 : vector<2x256xf32>
    %11 = math.exp %10 : vector<2x256xf32>
    %cst = arith.constant 1.000000e+00 : f32
    %12 = vector.broadcast %cst : f32 to vector<2x256xf32>
    %13 = arith.addf %12, %11 : vector<2x256xf32>
    %14 = arith.divf %12, %13 : vector<2x256xf32>
    %cst_6 = arith.constant dense<0xFF800000> : vector<256xf32>
    %15 = vector.multi_reduction <maximumf>, %14, %cst_6 [0] : vector<2x256xf32> to vector<256xf32>
    %16 = vector.shape_cast %15 : vector<256xf32> to vector<1x256xf32>
    %cst_7 = arith.constant 0.00999999977 : f32
    %17 = vector.broadcast %cst_7 : f32 to vector<1x256xf32>
    %18 = arith.cmpf ogt, %16, %17 : vector<1x256xf32>
    %19 = arith.extui %18 : vector<1x256xi1> to vector<1x256xi32>
    %20 = arith.sitofp %19 : vector<1x256xi32> to vector<1x256xf32>
    %21 = arith.index_cast %arg1 : i32 to index
    %22 = memref.load %arg3[%21] : memref<5xi32, #tpu.memory_space<smem>>
    %c1_i32_8 = arith.constant 1 : i32
    %23 = arith.cmpi eq, %22, %c1_i32_8 : i32
    %24 = arith.extui %23 : i1 to i32
    %25 = arith.sitofp %24 : i32 to f32
    %26 = vector.broadcast %25 : f32 to vector<1x256xf32>
    %27 = arith.maximumf %20, %26 : vector<1x256xf32>
    %28 = vector.broadcast %27 : vector<1x256xf32> to vector<32x256xf32>
    %29 = arith.mulf %7, %28 : vector<32x256xf32>
    %30 = arith.extui %2 : i1 to i32
    %c0_i32 = arith.constant 0 : i32
    %31 = arith.cmpi ne, %30, %c0_i32 : i32
    scf.if %31 {
      %c0_28 = arith.constant 0 : index
      %c0_29 = arith.constant 0 : index
      %59 = vector.load %arg8[%c0_28, %c0_29] : memref<32x256xf32, #tpu.memory_space<vmem>>, vector<32x256xf32>
      tpu.vector_store %arg8[%c0_28, %c0_29], %29 {strides = array<i32>} : memref<32x256xf32, #tpu.memory_space<vmem>>, vector<32x256xf32>,
      %cst_30 = arith.constant -1.000000e+30 : f32
      %60 = vector.broadcast %cst_30 : f32 to vector<1x256xf32>
      %c0_31 = arith.constant 0 : index
      %c0_32 = arith.constant 0 : index
      %61 = vector.load %arg9[%c0_31, %c0_32] : memref<1x256xf32, #tpu.memory_space<vmem>>, vector<1x256xf32>
      tpu.vector_store %arg9[%c0_31, %c0_32], %60 {strides = array<i32>} : memref<1x256xf32, #tpu.memory_space<vmem>>, vector<1x256xf32>,
      %cst_33 = arith.constant 0.000000e+00 : f32
      %62 = vector.broadcast %cst_33 : f32 to vector<1x256xf32>
      %c0_34 = arith.constant 0 : index
      %c0_35 = arith.constant 0 : index
      %63 = vector.load %arg10[%c0_34, %c0_35] : memref<1x256xf32, #tpu.memory_space<vmem>>, vector<1x256xf32>
      tpu.vector_store %arg10[%c0_34, %c0_35], %62 {strides = array<i32>} : memref<1x256xf32, #tpu.memory_space<vmem>>, vector<1x256xf32>,
      %cst_36 = arith.constant 0.000000e+00 : f32
      %64 = vector.broadcast %cst_36 : f32 to vector<32x256xf32>
      %c0_37 = arith.constant 0 : index
      %c0_38 = arith.constant 0 : index
      %65 = vector.load %arg11[%c0_37, %c0_38] : memref<32x256xf32, #tpu.memory_space<vmem>>, vector<32x256xf32>
      tpu.vector_store %arg11[%c0_37, %c0_38], %64 {strides = array<i32>} : memref<32x256xf32, #tpu.memory_space<vmem>>, vector<32x256xf32>,
    } else {
    }
    %c0_9 = arith.constant 0 : index
    %c0_10 = arith.constant 0 : index
    %32 = vector.load %arg8[%c0_9, %c0_10] : memref<32x256xf32, #tpu.memory_space<vmem>>, vector<32x256xf32>
    %33 = arith.mulf %29, %32 : vector<32x256xf32>
    %cst_11 = arith.constant dense<0.000000e+00> : vector<256xf32>
    %34 = vector.multi_reduction <add>, %33, %cst_11 [0] : vector<32x256xf32> to vector<256xf32>
    %35 = vector.shape_cast %34 : vector<256xf32> to vector<1x256xf32>
    %cst_12 = arith.constant 0.176776692 : f32
    %36 = vector.broadcast %cst_12 : f32 to vector<1x256xf32>
    %37 = arith.mulf %35, %36 : vector<1x256xf32>
    %c0_13 = arith.constant 0 : index
    %c0_14 = arith.constant 0 : index
    %38 = vector.load %arg9[%c0_13, %c0_14] : memref<1x256xf32, #tpu.memory_space<vmem>>, vector<1x256xf32>
    %39 = arith.maximumf %38, %37 : vector<1x256xf32>
    %c0_15 = arith.constant 0 : index
    %c0_16 = arith.constant 0 : index
    %40 = vector.load %arg9[%c0_15, %c0_16] : memref<1x256xf32, #tpu.memory_space<vmem>>, vector<1x256xf32>
    %41 = arith.subf %40, %39 : vector<1x256xf32>
    %42 = math.exp %41 : vector<1x256xf32>
    %43 = arith.subf %37, %39 : vector<1x256xf32>
    %44 = math.exp %43 : vector<1x256xf32>
    %c0_17 = arith.constant 0 : index
    %c0_18 = arith.constant 0 : index
    %45 = vector.load %arg10[%c0_17, %c0_18] : memref<1x256xf32, #tpu.memory_space<vmem>>, vector<1x256xf32>
    %46 = arith.mulf %42, %45 : vector<1x256xf32>
    %47 = arith.addf %46, %44 : vector<1x256xf32>
    %c0_19 = arith.constant 0 : index
    %c0_20 = arith.constant 0 : index
    %48 = vector.load %arg10[%c0_19, %c0_20] : memref<1x256xf32, #tpu.memory_space<vmem>>, vector<1x256xf32>
    tpu.vector_store %arg10[%c0_19, %c0_20], %47 {strides = array<i32>} : memref<1x256xf32, #tpu.memory_space<vmem>>, vector<1x256xf32>,
    %c0_21 = arith.constant 0 : index
    %c0_22 = arith.constant 0 : index
    %49 = vector.load %arg11[%c0_21, %c0_22] : memref<32x256xf32, #tpu.memory_space<vmem>>, vector<32x256xf32>
    %50 = vector.broadcast %42 : vector<1x256xf32> to vector<32x256xf32>
    %51 = arith.mulf %50, %49 : vector<32x256xf32>
    %52 = vector.broadcast %44 : vector<1x256xf32> to vector<32x256xf32>
    %53 = arith.mulf %52, %29 : vector<32x256xf32>
    %54 = arith.addf %51, %53 : vector<32x256xf32>
    %c0_23 = arith.constant 0 : index
    %c0_24 = arith.constant 0 : index
    %55 = vector.load %arg11[%c0_23, %c0_24] : memref<32x256xf32, #tpu.memory_space<vmem>>, vector<32x256xf32>
    tpu.vector_store %arg11[%c0_23, %c0_24], %54 {strides = array<i32>} : memref<32x256xf32, #tpu.memory_space<vmem>>, vector<32x256xf32>,
    %c0_25 = arith.constant 0 : index
    %c0_26 = arith.constant 0 : index
    %56 = vector.load %arg9[%c0_25, %c0_26] : memref<1x256xf32, #tpu.memory_space<vmem>>, vector<1x256xf32>
    tpu.vector_store %arg9[%c0_25, %c0_26], %39 {strides = array<i32>} : memref<1x256xf32, #tpu.memory_space<vmem>>, vector<1x256xf32>,
    %57 = arith.extui %5 : i1 to i32
    %c0_i32_27 = arith.constant 0 : i32
    %58 = arith.cmpi ne, %57, %c0_i32_27 : i32
    scf.if %58 {
      %c0_28 = arith.constant 0 : index
      %c0_29 = arith.constant 0 : index
      %59 = vector.load %arg11[%c0_28, %c0_29] : memref<32x256xf32, #tpu.memory_space<vmem>>, vector<32x256xf32>
      %c0_30 = arith.constant 0 : index
      %c0_31 = arith.constant 0 : index
      %60 = vector.load %arg10[%c0_30, %c0_31] : memref<1x256xf32, #tpu.memory_space<vmem>>, vector<1x256xf32>
      %61 = tpu.reciprocal %60 {approx = true} : vector<1x256xf32> -> vector<1x256xf32>
      %62 = vector.broadcast %61 : vector<1x256xf32> to vector<32x256xf32>
      %63 = arith.mulf %59, %62 : vector<32x256xf32>
      %c0_32 = arith.constant 0 : index
      %c0_33 = arith.constant 0 : index
      %c0_34 = arith.constant 0 : index
      %64 = vector.load %arg7[%c0_32, %c0_33, %c0_34] : memref<1x32x256xf32, #tpu.memory_space<vmem>>, vector<1x32x256xf32>
      %65 = vector.shape_cast %64 : vector<1x32x256xf32> to vector<32x256xf32>
      %66 = vector.shape_cast %63 : vector<32x256xf32> to vector<1x32x256xf32>
      tpu.vector_store %arg7[%c0_32, %c0_33, %c0_34], %66 {strides = array<i32>} : memref<1x32x256xf32, #tpu.memory_space<vmem>>, vector<1x32x256xf32>,
    } else {
    }
    return
  }
  func.func @transform_0(%arg0: i32, %arg1: i32, %arg2: memref<5xi32, #tpu.memory_space<smem>>, %arg3: memref<5xi32, #tpu.memory_space<smem>>, %arg4: memref<5xi32, #tpu.memory_space<smem>>) -> (i32, i32, i32) {
    %c0_i32 = arith.constant 0 : i32
    %c0_i32_0 = arith.constant 0 : i32
    return %arg1, %c0_i32, %arg0 : i32, i32, i32
  }
  func.func @transform_1(%arg0: i32, %arg1: i32, %arg2: memref<5xi32, #tpu.memory_space<smem>>, %arg3: memref<5xi32, #tpu.memory_space<smem>>, %arg4: memref<5xi32, #tpu.memory_space<smem>>) -> (i32, i32, i32) {
    %c0_i32 = arith.constant 0 : i32
    %c0_i32_0 = arith.constant 0 : i32
    return %arg1, %c0_i32, %arg0 : i32, i32, i32
  }
  func.func @transform_2(%arg0: i32, %arg1: i32, %arg2: memref<5xi32, #tpu.memory_space<smem>>, %arg3: memref<5xi32, #tpu.memory_space<smem>>, %arg4: memref<5xi32, #tpu.memory_space<smem>>) -> (i32, i32, i32) {
    %0 = arith.index_cast %arg1 : i32 to index
    %1 = memref.load %arg2[%0] : memref<5xi32, #tpu.memory_space<smem>>
    %c0_i32 = arith.constant 0 : i32
    %c0_i32_0 = arith.constant 0 : i32
    return %1, %c0_i32, %arg0 : i32, i32, i32
  }
}

</mosaic_0001>

<llo_original>
// kernel: tpu_custom_call.1
$region0: #{tpu_custom_call.1}
  #allocation0 [shape = 'u32[]', space=smem, size = 0x4, offset = 0x4, fixed_abs, tag = 'smem constant byte address 0x4 - core index']
  #allocation1 [shape = 'u32[144,128]{1,0:T(1,128)}', space=vmem, size = 0x12000, scoped, tag = 'internal scratch']
  #allocation2 [shape = 'f32[32,256]{1,0:T(8,128)}', space=vmem, size = 0x8000, scoped, tag = 'scratch operand']
  #allocation3 [shape = 'f32[1,256]{1,0:T(1,128)}', space=vmem, size = 0x400, scoped, tag = 'scratch operand']
  #allocation4 [shape = 'f32[1,256]{1,0:T(1,128)}', space=vmem, size = 0x400, scoped, tag = 'scratch operand']
  #allocation5 [shape = 'f32[32,256]{1,0:T(8,128)}', space=vmem, size = 0x8000, scoped, tag = 'scratch operand']
  #allocation6 [shape = 's32[1]{0}', space=sflag, size = 0x4, scoped, tag = 'scoped memory for tpu_custom_call.1']
  #allocation7 [shape = 'u8[512]{0}', space=smem, size = 0x200, scoped, tag = 'prefetched SMEM operand 0']
  #allocation8 [shape = 'u8[512]{0}', space=smem, size = 0x200, scoped, tag = 'prefetched SMEM operand 1']
  #allocation9 [shape = 'u8[512]{0}', space=smem, size = 0x200, scoped, tag = 'prefetched SMEM operand 2']
  %s0 = inlined_call_operand.hbm [shape: s32[5], index: 0, kind: input, shape index: {}]
  %s1 = inlined_call_operand.vmem [shape: s32[5], index: 1, kind: input, shape index: {}]
  %s2 = inlined_call_operand.vmem [shape: s32[5], index: 2, kind: input, shape index: {}]
  %s3 = inlined_call_operand.hbm [shape: f32[5,2,256], index: 3, kind: input, shape index: {}]
  %s4 = inlined_call_operand.hbm [shape: f32[5,32,256], index: 4, kind: input, shape index: {}]
  %s5 = inlined_call_operand.hbm [shape: f32[2,32,256], index: 5, kind: output, shape index: {}]
  %s6 = sld [smem:[#allocation0]]
  $region57: #{tpu_custom_call.1} parent=0
    _
  %s8 = ssub.s32 1, %s6
  %s9 = scalar_select 0, %s8, %s6
  %11 = dma.hbm_to_smem %s0, 16, [#allocation7], [#allocation6]
  %s12 = sshll.u32 %s1, 4
  %s13 = int_to_ptr.vmem [resolvable:$true] %s12
  %15 = dma.vmem_to_smem %s13, 16, [#allocation8], [#allocation6]
  %s16 = sshll.u32 %s2, 4
  %s17 = int_to_ptr.vmem [resolvable:$true] %s16
  %19 = dma.vmem_to_smem %s17, 16, [#allocation9], [#allocation6]
  %20 = dma.done [#allocation6], 48
  %21 = sfence
  $region1: #{tpu_custom_call.1} parent=0
    #allocation10 [shape = 'u8[4096]{0}', space=vmem, size = 0x1000, scoped, tag = 'input window, operand 3']
    #allocation11 [shape = 's32[2]{0}', space=sflag, size = 0x8, scoped, tag = 'scoped memory for tpu_custom_call.1']
    #allocation12 [shape = 's32[2]{0}', space=sflag, size = 0x8, scoped, tag = 'scoped memory for tpu_custom_call.1']
    #allocation13 [shape = 'u8[65536]{0}', space=vmem, size = 0x10000, scoped, tag = 'input window, operand 4']
    #allocation14 [shape = 's32[2]{0}', space=sflag, size = 0x8, scoped, tag = 'scoped memory for tpu_custom_call.1']
    #allocation15 [shape = 'u8[65536]{0}', space=vmem, size = 0x10000, scoped, tag = 'output window, operand 0']
    %22 = vsyncpa [#allocation11], 0
    %s23 = scalar_lea.sflag [#allocation11], 1
    %24 = vsyncpa %s23, 0
    %25 = vsyncpa [#allocation14], 0
    %s26 = scalar_lea.sflag [#allocation14], 1
    %27 = vsyncpa %s26, 0
    %28 = vsyncpa [#allocation12], 0
    %s29 = scalar_lea.sflag [#allocation12], 1
    %30 = vsyncpa %s29, 0
    loop: start=0, step=1, limit=7
    $region2: #{tpu_custom_call.1} parent=1 // loop_pre_header
      _
    $region3: #{tpu_custom_call.1} parent=1 // loop_header
      %s32 = sphi 0, %s36
      %p33 = scmp.ge.s32.totalorder %s32, 7
      %s39 = sphi 0, %s51
      %s40 = sphi 0, %s47
      %s41 = sphi 0, %s39
      %s42 = sphi 0, %s40
      %s43 = sphi 0, %s41
      %s44 = sphi 0, %s42
      %s56 = sphi 0, %s58
      %s59 = sphi 0, %s56
      %s60 = sphi 0, %s59
      %s76 = sphi 0, %s60
      %s84 = sphi 0, %s86
      %s87 = sphi 0, %s84
      %s88 = sphi 0, %s87
      %s104 = sphi 0, %s88
      %s114 = sphi 0, %s116
      %s117 = sphi 0, %s114
      %s118 = sphi 0, %s117
      %s134 = sphi 0, %s118
    $region4: #{tpu_custom_call.1} parent=1 // loop_header_branch
      %35 = sbr.rel (%p33) target = $region8
    $region5: #{tpu_custom_call.1} parent=1 // loop_body
      %s37 = ssub.s32 %s32, 1
      %s38 = ssub.s32 %s32, 2
      %s45 = sadd.s32 1, %s40
      %p46 = scmp.ge.s32.totalorder %s45, 5
      %s47 = scalar_select %p46, 0, %s45
      %s48 = sadd.s32 1, %s39
      %s49 = scalar_select %p46, %s48, %s39
      %p50 = scmp.ge.s32.totalorder %s49, 1
      %s51 = scalar_select %p50, 0, %s49
      %s52 = ssub.s32 %s40, %s47
      %s53 = ssub.s32 %s39, %s51
      %s54 = sor.u32 %s52, %s53
      %p55 = scmp.eq.s32.totalorder %s54, 0
      %s57 = sadd.s32 %s56, 1
      %s58 = scalar_select %p55, %s56, %s57
      %p61 = pneg %p55
      %p62 = scmp.eq.s32.totalorder %s32, 4
      %p63 = por %p61, %p62
      %p64 = scmp.ne.s32.totalorder %s56, %s59
      %p65 = scmp.eq.s32.totalorder %s32, 0
      %p66 = por %p64, %p65
      %p67 = scmp.ne.s32.totalorder %s56, %s59
      %p68 = scmp.eq.s32.totalorder %s37, 4
      %p69 = por %p67, %p68
      %p70 = scmp.ne.s32.totalorder %s59, %s60
      %p71 = scmp.eq.s32.totalorder %s37, 0
      %p72 = por %p70, %p71
      %p73 = scmp.ne.s32.totalorder %s59, %s60
      %p74 = scmp.eq.s32.totalorder %s38, 4
      %p75 = por %p73, %p74
      %p77 = scmp.ne.s32.totalorder %s60, %s76
      %p78 = scmp.eq.s32.totalorder %s38, 0
      %p79 = por %p77, %p78
      %s80 = ssub.s32 %s40, %s47
      %s81 = ssub.s32 %s39, %s51
      %s82 = sor.u32 %s80, %s81
      %p83 = scmp.eq.s32.totalorder %s82, 0
      %s85 = sadd.s32 %s84, 1
      %s86 = scalar_select %p83, %s84, %s85
      %p89 = pneg %p83
      %p90 = scmp.eq.s32.totalorder %s32, 4
      %p91 = por %p89, %p90
      %p92 = scmp.ne.s32.totalorder %s84, %s87
      %p93 = scmp.eq.s32.totalorder %s32, 0
      %p94 = por %p92, %p93
      %p95 = scmp.ne.s32.totalorder %s84, %s87
      %p96 = scmp.eq.s32.totalorder %s37, 4
      %p97 = por %p95, %p96
      %p98 = scmp.ne.s32.totalorder %s87, %s88
      %p99 = scmp.eq.s32.totalorder %s37, 0
      %p100 = por %p98, %p99
      %p101 = scmp.ne.s32.totalorder %s87, %s88
      %p102 = scmp.eq.s32.totalorder %s38, 4
      %p103 = por %p101, %p102
      %p105 = scmp.ne.s32.totalorder %s88, %s104
      %p106 = scmp.eq.s32.totalorder %s38, 0
      %p107 = por %p105, %p106
      %s108 = sld [smem:[#allocation7 + %s40]]
      %s109 = sld [smem:[#allocation7 + %s47]]
      %s110 = ssub.s32 %s108, %s109
      %s111 = ssub.s32 %s39, %s51
      %s112 = sor.u32 %s110, %s111
      %p113 = scmp.eq.s32.totalorder %s112, 0
      %s115 = sadd.s32 %s114, 1
      %s116 = scalar_select %p113, %s114, %s115
      %p119 = pneg %p113
      %p120 = scmp.eq.s32.totalorder %s32, 4
      %p121 = por %p119, %p120
      %p122 = scmp.ne.s32.totalorder %s114, %s117
      %p123 = scmp.eq.s32.totalorder %s32, 0
      %p124 = por %p122, %p123
      %p125 = scmp.ne.s32.totalorder %s114, %s117
      %p126 = scmp.eq.s32.totalorder %s37, 4
      %p127 = por %p125, %p126
      %p128 = scmp.ne.s32.totalorder %s117, %s118
      %p129 = scmp.eq.s32.totalorder %s37, 0
      %p130 = por %p128, %p129
      %p131 = scmp.ne.s32.totalorder %s117, %s118
      %p132 = scmp.eq.s32.totalorder %s38, 4
      %p133 = por %p131, %p132
      %p135 = scmp.ne.s32.totalorder %s118, %s134
      %p136 = scmp.eq.s32.totalorder %s38, 0
      %p137 = por %p135, %p136
      %p138 = scmp.le.s32.totalorder 1, %s32
      %p139 = scmp.lt.s32.totalorder %s32, 6
      %p140 = pnand %p138, %p139
      %p141 = pneg %p140
      // Predicated region
      $region9: #{tpu_custom_call.1} parent=5 // pred_check
        _
      $region10: #{tpu_custom_call.1} parent=5 // pred_check_branch
        %143 = sbr.rel (%p140) target = $region12
      $region11: #{tpu_custom_call.1} parent=5 // pred_region
        %s144 = ssub.s32 %s32, 1
      $region12: #{tpu_custom_call.1} parent=5 // pred_fallthru
        _
      %p145 = scmp.lt.s32.totalorder %s32, 5
      // Predicated region
      $region13: #{tpu_custom_call.1} parent=5 // pred_check
        %p146 = pneg %p145
      $region14: #{tpu_custom_call.1} parent=5 // pred_check_branch
        %148 = sbr.rel (%p146) target = $region16
      $region15: #{tpu_custom_call.1} parent=5 // pred_region
        // Predicated region
        $region17: #{tpu_custom_call.1} parent=15 // pred_check
          %p149 = pneg %p66
        $region18: #{tpu_custom_call.1} parent=15 // pred_check_branch
          %151 = sbr.rel (%p149) target = $region20
        $region19: #{tpu_custom_call.1} parent=15 // pred_region
          %s152 = sand.u32 %s56, 1
          %s153 = scalar_lea.sflag [#allocation11], %s152
          %s154 = sand.u32 %s56, 1
          %s155 = smul.addr %s154, 4
          %s156 = scalar_lea.vmem [#allocation10], %s155
          %s157 = smul.u32 2, %s39
          %s159 = ssub.s32 64, 64
          %160 = vsyncadd %s153, %s159
          %s161 = smul.addr %s40, 2
          %s162 = sadd.s32 %s157, %s161
          %s163 = smul.addr %s162, 32
          %s164 = scalar_lea.hbm %s3, %s163
          %s166 = sshll.u32 %s156, 4
          %s167 = int_to_ptr.vmem [resolvable:$true] %s166
          %169 = dma.hbm_to_vmem [thread:$0]  %s164, 64, %s167, %s153
        $region20: #{tpu_custom_call.1} parent=15 // pred_fallthru
          _
        // Predicated region
        $region21: #{tpu_custom_call.1} parent=15 // pred_check
          %p170 = pneg %p94
        $region22: #{tpu_custom_call.1} parent=15 // pred_check_branch
          %172 = sbr.rel (%p170) target = $region24
        $region23: #{tpu_custom_call.1} parent=15 // pred_region
          %s173 = sand.u32 %s84, 1
          %s174 = scalar_lea.sflag [#allocation14], %s173
          %s175 = sand.u32 %s84, 1
          %s176 = smul.addr %s175, 64
          %s177 = scalar_lea.vmem [#allocation13], %s176
          %s178 = smul.u32 2, %s39
          %s180 = ssub.s32 1024, 1024
          %181 = vsyncadd %s174, %s180
          %s182 = smul.addr %s40, 8
          %s183 = sadd.s32 %s178, %s182
          %s184 = smul.addr %s183, 128
          %s185 = scalar_lea.hbm %s4, %s184
          %s186 = sshll.u32 %s177, 4
          %s187 = int_to_ptr.vmem [resolvable:$true] %s186
          %192 = dma.hbm_to_vmem [thread:$0]  %s185, 1024, %s187, %s174, 256, 256, 16
        $region24: #{tpu_custom_call.1} parent=15 // pred_fallthru
          _
      $region16: #{tpu_custom_call.1} parent=5 // pred_fallthru
        _
      %p193 = scmp.le.s32.totalorder 1, %s32
      %p194 = scmp.lt.s32.totalorder %s32, 6
      %p195 = pnand %p193, %p194
      %p196 = pneg %p195
      // Predicated region
      $region25: #{tpu_custom_call.1} parent=5 // pred_check
        _
      $region26: #{tpu_custom_call.1} parent=5 // pred_check_branch
        %198 = sbr.rel (%p195) target = $region28
      $region27: #{tpu_custom_call.1} parent=5 // pred_region
        %s199 = ssub.s32 %s32, 1
        %s200 = sand.u32 %s59, 1
        %s201 = scalar_lea.sflag [#allocation11], %s200
        %s202 = sand.u32 %s59, 1
        %s203 = smul.addr %s202, 4
        %s204 = scalar_lea.vmem [#allocation10], %s203
        // Predicated region
        $region29: #{tpu_custom_call.1} parent=27 // pred_check
          %p205 = pneg %p72
        $region30: #{tpu_custom_call.1} parent=27 // pred_check_branch
          %207 = sbr.rel (%p205) target = $region32
        $region31: #{tpu_custom_call.1} parent=27 // pred_region
          %208 = dma.done %s201, 64
        $region32: #{tpu_custom_call.1} parent=27 // pred_fallthru
          _
        %s209 = sand.u32 %s87, 1
        %s210 = scalar_lea.sflag [#allocation14], %s209
        %s211 = sand.u32 %s87, 1
        %s212 = smul.addr %s211, 64
        %s213 = scalar_lea.vmem [#allocation13], %s212
        // Predicated region
        $region33: #{tpu_custom_call.1} parent=27 // pred_check
          %p214 = pneg %p100
        $region34: #{tpu_custom_call.1} parent=27 // pred_check_branch
          %216 = sbr.rel (%p214) target = $region36
        $region35: #{tpu_custom_call.1} parent=27 // pred_region
          %217 = dma.done %s210, 1024
        $region36: #{tpu_custom_call.1} parent=27 // pred_fallthru
          _
        %s218 = sand.u32 %s59, 1
        %s219 = scalar_lea.sflag [#allocation11], %s218
        %s220 = sand.u32 %s59, 1
        %s221 = smul.addr %s220, 4
        %s222 = scalar_lea.vmem [#allocation10], %s221
        %p223 = pneg %p72
        %p224 = pneg %p69
        %s225 = sand.u32 %s87, 1
        %s226 = scalar_lea.sflag [#allocation14], %s225
        %s227 = sand.u32 %s87, 1
        %s228 = smul.addr %s227, 64
        %s229 = scalar_lea.vmem [#allocation13], %s228
        %p230 = pneg %p100
        %p231 = pneg %p97
        %p232 = pneg %p130
        %p233 = pneg %p127
        %s234 = sand.u32 %s117, 1
        %s235 = scalar_lea.sflag [#allocation12], %s234
        %s236 = sand.u32 %s117, 1
        %s237 = smul.addr %s236, 64
        %s238 = scalar_lea.vmem [#allocation15], %s237
        %s239 = smul.u32 2, %s41
        %s240 = smul.u32 2, %s41
        %s241 = sld [smem:[#allocation7 + %s42]]
        %s242 = smul.u32 2, %s41
        %s243 = sld [smem:[#allocation8 + %s42]]
        %p244 = scmp.eq.s32.totalorder %s243, 1
        %s245 = sld [smem:[#allocation9 + %s42]]
        %p246 = scmp.eq.s32.totalorder %s245, 1
        %v247 = vld [vmem:[%s213] sm:$0xff]
        %v248 = vld [vmem:[%s213 + $0x8] sm:$0xff]
        %v249 = vld [vmem:[%s213 + $0x10] sm:$0xff]
        %v250 = vld [vmem:[%s213 + $0x18] sm:$0xff]
        %v251 = vld [vmem:[%s213 + $0x20] sm:$0xff]
        %v252 = vld [vmem:[%s213 + $0x28] sm:$0xff]
        %v253 = vld [vmem:[%s213 + $0x30] sm:$0xff]
        %v254 = vld [vmem:[%s213 + $0x38] sm:$0xff]
        %v255 = vld [vmem:[%s204] sm:$0xf]
        %v256 = vxor.u32 %v255, 2147483648
        %v257 = vmul.f32 %v256, 1.442695
        %v258 = vpow.pop %v257
        %v259 = vadd.f32 %v258, 1.0
        %v260 = vrcp.pop %v259
        %v261 = vmul.f32 1.0, %v260
        %v264 = vunpack.c.l.s4 1983009808
        %v265 = vunpack.c.0.s8 %v264
        %v266 = vlaneseq
        %v267 = vshrl.u32 %v266, 7
        %v268 = vsub.s32 %v265, %v267
        %v269 = vrot.slane %v261, %v268
        %v270 = vcombine.high %v269, %v269
        %vm273 = vcmask 1041408
        %v274 = vsel %vm273, %v269, -inf
        %v275 = vrot.slane %v274, 4
        %v276 = vmax.f32 %v274, %v275
        %v277 = vrot.slane %v276, 2
        %v278 = vmax.f32 %v276, %v277
        %v279 = vrot.slane %v278, 1
        %v280 = vmax.f32 %v278, %v279
        %v281 = vsel %vm273, %v270, -inf
        %v282 = vrot.slane %v281, 4
        %v283 = vmax.f32 %v281, %v282
        %v284 = vrot.slane %v283, 2
        %v285 = vmax.f32 %v283, %v284
        %v286 = vrot.slane %v285, 1
        %v287 = vmax.f32 %v285, %v286
        %vm288 = vcmp.gt.f32.partialorder %v280, 0.01
        %vm289 = vcmp.gt.f32.partialorder %v287, 0.01
        %v290 = vsel %vm288, 1, 0
        %v291 = vsel %vm289, 1, 0
        %v292 = vcvt.s32.f32 %v290
        %v293 = vcvt.s32.f32 %v291
        %s294 = scalar_select %p244, 1, 0
        %s295 = scvt.s32.f32 %s294
        %v296 = vstv %s295
        %v297 = vmax.f32 %v292, %v296
        %v298 = vmax.f32 %v293, %v296
        %v299 = vmul.f32 %v247, %v297
        %v300 = vmul.f32 %v248, %v298
        %v301 = vmul.f32 %v249, %v297
        %v302 = vmul.f32 %v250, %v298
        %v303 = vmul.f32 %v251, %v297
        %v304 = vmul.f32 %v252, %v298
        %v305 = vmul.f32 %v253, %v297
        %v306 = vmul.f32 %v254, %v298
        // Predicated region
        $region37: #{tpu_custom_call.1} parent=27 // pred_check
          %p307 = pneg %p244
        $region38: #{tpu_custom_call.1} parent=27 // pred_check_branch
          %309 = sbr.rel (%p307) target = $region40
        $region39: #{tpu_custom_call.1} parent=27 // pred_region
          %310 = vst [vmem:[#allocation2] sm:$0xff] %v299
          %311 = vst [vmem:[#allocation2 + $0x8] sm:$0xff] %v300
          %312 = vst [vmem:[#allocation2 + $0x10] sm:$0xff] %v301
          %313 = vst [vmem:[#allocation2 + $0x18] sm:$0xff] %v302
          %314 = vst [vmem:[#allocation2 + $0x20] sm:$0xff] %v303
          %315 = vst [vmem:[#allocation2 + $0x28] sm:$0xff] %v304
          %316 = vst [vmem:[#allocation2 + $0x30] sm:$0xff] %v305
          %317 = vst [vmem:[#allocation2 + $0x38] sm:$0xff] %v306
          %v318 = vlaneseq
          %vm319 = vcmp.ge.s32.totalorder %v318, 0
          %vm320 = vcmp.lt.s32.totalorder %v318, 256
          %vm321 = vmand %vm319, %vm320
          %322 = vst.msk [vmem:[#allocation3] sm:$0x3] %vm321, -1e+30
          %323 = vst.msk [vmem:[#allocation4] sm:$0x3] %vm321, 0.0
          %324 = vst [vmem:[#allocation5] sm:$0xff] 0.0
          %325 = vst [vmem:[#allocation5 + $0x8] sm:$0xff] 0.0
          %326 = vst [vmem:[#allocation5 + $0x10] sm:$0xff] 0.0
          %327 = vst [vmem:[#allocation5 + $0x18] sm:$0xff] 0.0
          %328 = vst [vmem:[#allocation5 + $0x20] sm:$0xff] 0.0
          %329 = vst [vmem:[#allocation5 + $0x28] sm:$0xff] 0.0
          %330 = vst [vmem:[#allocation5 + $0x30] sm:$0xff] 0.0
          %331 = vst [vmem:[#allocation5 + $0x38] sm:$0xff] 0.0
        $region40: #{tpu_custom_call.1} parent=27 // pred_fallthru
          _
        %v332 = vld [vmem:[#allocation2] sm:$0xff]
        %v333 = vld [vmem:[#allocation2 + $0x8] sm:$0xff]
        %v334 = vld [vmem:[#allocation2 + $0x10] sm:$0xff]
        %v335 = vld [vmem:[#allocation2 + $0x18] sm:$0xff]
        %v336 = vld [vmem:[#allocation2 + $0x20] sm:$0xff]
        %v337 = vld [vmem:[#allocation2 + $0x28] sm:$0xff]
        %v338 = vld [vmem:[#allocation2 + $0x30] sm:$0xff]
        %v339 = vld [vmem:[#allocation2 + $0x38] sm:$0xff]
        %v340 = vmul.f32 %v299, %v332
        %v341 = vmul.f32 %v300, %v333
        %v342 = vmul.f32 %v301, %v334
        %v343 = vmul.f32 %v302, %v335
        %v344 = vmul.f32 %v303, %v336
        %v345 = vmul.f32 %v304, %v337
        %v346 = vmul.f32 %v305, %v338
        %v347 = vmul.f32 %v306, %v339
        %v348 = vadd.f32 %v340, %v342
        %v349 = vadd.f32 %v348, %v344
        %v350 = vadd.f32 %v349, %v346
        %v351 = vrot.slane %v350, 4
        %v352 = vadd.f32 %v350, %v351
        %v353 = vrot.slane %v352, 2
        %v354 = vadd.f32 %v352, %v353
        %v355 = vrot.slane %v354, 1
        %v356 = vadd.f32 %v354, %v355
        %v357 = vadd.f32 %v341, %v343
        %v358 = vadd.f32 %v357, %v345
        %v359 = vadd.f32 %v358, %v347
        %v360 = vrot.slane %v359, 4
        %v361 = vadd.f32 %v359, %v360
        %v362 = vrot.slane %v361, 2
        %v363 = vadd.f32 %v361, %v362
        %v364 = vrot.slane %v363, 1
        %v365 = vadd.f32 %v363, %v364
        %v366 = vmul.f32 %v356, 0.17677669
        %v367 = vmul.f32 %v365, 0.17677669
        %v368 = vld [vmem:[#allocation3] sm:$0x3]
        %v371 = vcombine.low %v366, %v367
        %v373 = vunpack.c.l.s4 1966171168
        %v374 = vunpack.c.0.s8 %v373
        %v375 = vlaneseq
        %v376 = vshrl.u32 %v375, 7
        %v377 = vsub.s32 %v374, %v376
        %v378 = vrot.slane %v371, %v377
        %v380 = vunpack.c.l.s4 1966171168
        %v381 = vunpack.c.0.s8 %v380
        %v382 = vlaneseq
        %v383 = vshrl.u32 %v382, 7
        %v384 = vsub.s32 %v381, %v383
        %v385 = vrot.slane %v378, %v384
        %v387 = vmax.f32 %v368, %v385
        %v388 = vsub.f32 %v368, %v387
        %v389 = vmul.f32 %v388, 1.442695
        %v390 = vpow.pop %v389
        %v392 = vlaneseq
        %v393 = vshrl.u32 %v392, 7
        %v394 = vsub.s32 0, %v393
        %v395 = vrot.slane %v387, %v394
        %v396 = vlaneseq
        %v397 = vshrl.u32 %v396, 7
        %v398 = vsub.s32 1, %v397
        %v399 = vrot.slane %v387, %v398
        %v402 = vsub.f32 %v366, %v395
        %v403 = vsub.f32 %v367, %v399
        %v404 = vmul.f32 %v402, 1.442695
        %v405 = vpow.pop %v404
        %v406 = vmul.f32 %v403, 1.442695
        %v407 = vpow.pop %v406
        %v408 = vld [vmem:[#allocation4] sm:$0x3]
        %v409 = vmul.f32 %v390, %v408
        %v412 = vcombine.low %v405, %v407
        %v414 = vunpack.c.l.s4 1966171168
        %v415 = vunpack.c.0.s8 %v414
        %v416 = vlaneseq
        %v417 = vshrl.u32 %v416, 7
        %v418 = vsub.s32 %v415, %v417
        %v419 = vrot.slane %v412, %v418
        %v421 = vunpack.c.l.s4 1966171168
        %v422 = vunpack.c.0.s8 %v421
        %v423 = vlaneseq
        %v424 = vshrl.u32 %v423, 7
        %v425 = vsub.s32 %v422, %v424
        %v426 = vrot.slane %v419, %v425
        %v428 = vadd.f32 %v409, %v426
        %v429 = vlaneseq
        %vm430 = vcmp.ge.s32.totalorder %v429, 0
        %vm431 = vcmp.lt.s32.totalorder %v429, 256
        %vm432 = vmand %vm430, %vm431
        %433 = vst.msk [vmem:[#allocation4] sm:$0x3] %vm432, %v428
        %v434 = vld [vmem:[#allocation5] sm:$0xff]
        %v435 = vld [vmem:[#allocation5 + $0x8] sm:$0xff]
        %v436 = vld [vmem:[#allocation5 + $0x10] sm:$0xff]
        %v437 = vld [vmem:[#allocation5 + $0x18] sm:$0xff]
        %v438 = vld [vmem:[#allocation5 + $0x20] sm:$0xff]
        %v439 = vld [vmem:[#allocation5 + $0x28] sm:$0xff]
        %v440 = vld [vmem:[#allocation5 + $0x30] sm:$0xff]
        %v441 = vld [vmem:[#allocation5 + $0x38] sm:$0xff]
        %v443 = vlaneseq
        %v444 = vshrl.u32 %v443, 7
        %v445 = vsub.s32 0, %v444
        %v446 = vrot.slane %v390, %v445
        %v447 = vlaneseq
        %v448 = vshrl.u32 %v447, 7
        %v449 = vsub.s32 1, %v448
        %v450 = vrot.slane %v390, %v449
        %v453 = vmul.f32 %v446, %v434
        %v454 = vmul.f32 %v450, %v435
        %v455 = vmul.f32 %v446, %v436
        %v456 = vmul.f32 %v450, %v437
        %v457 = vmul.f32 %v446, %v438
        %v458 = vmul.f32 %v450, %v439
        %v459 = vmul.f32 %v446, %v440
        %v460 = vmul.f32 %v450, %v441
        %v461 = vlaneseq
        %v462 = vshrl.u32 %v461, 7
        %v463 = vsub.s32 0, %v462
        %v464 = vrot.slane %v405, %v463
        %v465 = vlaneseq
        %v466 = vshrl.u32 %v465, 7
        %v467 = vsub.s32 0, %v466
        %v468 = vrot.slane %v407, %v467
        %v469 = vmul.f32 %v464, %v299
        %v470 = vmul.f32 %v468, %v300
        %v471 = vmul.f32 %v464, %v301
        %v472 = vmul.f32 %v468, %v302
        %v473 = vmul.f32 %v464, %v303
        %v474 = vmul.f32 %v468, %v304
        %v475 = vmul.f32 %v464, %v305
        %v476 = vmul.f32 %v468, %v306
        %v477 = vadd.f32 %v453, %v469
        %v478 = vadd.f32 %v454, %v470
        %v479 = vadd.f32 %v455, %v471
        %v480 = vadd.f32 %v456, %v472
        %v481 = vadd.f32 %v457, %v473
        %v482 = vadd.f32 %v458, %v474
        %v483 = vadd.f32 %v459, %v475
        %v484 = vadd.f32 %v460, %v476
        %485 = vst [vmem:[#allocation5] sm:$0xff] %v477
        %486 = vst [vmem:[#allocation5 + $0x8] sm:$0xff] %v478
        %487 = vst [vmem:[#allocation5 + $0x10] sm:$0xff] %v479
        %488 = vst [vmem:[#allocation5 + $0x18] sm:$0xff] %v480
        %489 = vst [vmem:[#allocation5 + $0x20] sm:$0xff] %v481
        %490 = vst [vmem:[#allocation5 + $0x28] sm:$0xff] %v482
        %491 = vst [vmem:[#allocation5 + $0x30] sm:$0xff] %v483
        %492 = vst [vmem:[#allocation5 + $0x38] sm:$0xff] %v484
        %493 = vst.msk [vmem:[#allocation3] sm:$0x3] %vm432, %v387
        // Predicated region
        $region41: #{tpu_custom_call.1} parent=27 // pred_check
          %p494 = pneg %p246
        $region42: #{tpu_custom_call.1} parent=27 // pred_check_branch
          %496 = sbr.rel (%p494) target = $region44
        $region43: #{tpu_custom_call.1} parent=27 // pred_region
          %v497 = vld [vmem:[#allocation5] sm:$0xff]
          %v498 = vld [vmem:[#allocation5 + $0x8] sm:$0xff]
          %v499 = vld [vmem:[#allocation5 + $0x10] sm:$0xff]
          %v500 = vld [vmem:[#allocation5 + $0x18] sm:$0xff]
          %v501 = vld [vmem:[#allocation5 + $0x20] sm:$0xff]
          %v502 = vld [vmem:[#allocation5 + $0x28] sm:$0xff]
          %v503 = vld [vmem:[#allocation5 + $0x30] sm:$0xff]
          %v504 = vld [vmem:[#allocation5 + $0x38] sm:$0xff]
          %v505 = vld [vmem:[#allocation4] sm:$0x3]
          %v506 = vrcp.pop %v505
          %v508 = vlaneseq
          %v509 = vshrl.u32 %v508, 7
          %v510 = vsub.s32 0, %v509
          %v511 = vrot.slane %v506, %v510
          %v512 = vlaneseq
          %v513 = vshrl.u32 %v512, 7
          %v514 = vsub.s32 1, %v513
          %v515 = vrot.slane %v506, %v514
          %v518 = vmul.f32 %v497, %v511
          %v519 = vmul.f32 %v498, %v515
          %v520 = vmul.f32 %v499, %v511
          %v521 = vmul.f32 %v500, %v515
          %v522 = vmul.f32 %v501, %v511
          %v523 = vmul.f32 %v502, %v515
          %v524 = vmul.f32 %v503, %v511
          %v525 = vmul.f32 %v504, %v515
          %526 = vst [vmem:[%s238] sm:$0xff] %v518
          %527 = vst [vmem:[%s238 + $0x8] sm:$0xff] %v519
          %528 = vst [vmem:[%s238 + $0x10] sm:$0xff] %v520
          %529 = vst [vmem:[%s238 + $0x18] sm:$0xff] %v521
          %530 = vst [vmem:[%s238 + $0x20] sm:$0xff] %v522
          %531 = vst [vmem:[%s238 + $0x28] sm:$0xff] %v523
          %532 = vst [vmem:[%s238 + $0x30] sm:$0xff] %v524
          %533 = vst [vmem:[%s238 + $0x38] sm:$0xff] %v525
        $region44: #{tpu_custom_call.1} parent=27 // pred_fallthru
          _
        %s534 = sand.u32 %s117, 1
        %s535 = scalar_lea.sflag [#allocation12], %s534
        %s536 = sand.u32 %s117, 1
        %s537 = smul.addr %s536, 64
        %s538 = scalar_lea.vmem [#allocation15], %s537
        // Predicated region
        $region45: #{tpu_custom_call.1} parent=27 // pred_check
          %p539 = pneg %p127
        $region46: #{tpu_custom_call.1} parent=27 // pred_check_branch
          %541 = sbr.rel (%p539) target = $region48
        $region47: #{tpu_custom_call.1} parent=27 // pred_region
          %s542 = sld [smem:[#allocation7 + %s42]]
          %s543 = smul.u32 2, %s41
          %s545 = ssub.s32 1024, 1024
          %546 = vsyncadd %s535, %s545
          %s547 = smul.addr %s542, 8
          %s548 = sadd.s32 %s543, %s547
          %s549 = smul.addr %s548, 128
          %s550 = scalar_lea.hbm %s5, %s549
          %s551 = sshll.u32 %s538, 4
          %s552 = int_to_ptr.vmem [resolvable:$true] %s551
          %557 = dma.vmem_to_hbm [thread:$0]  %s552, 1024, %s550, %s535, 256, 256, 16
        $region48: #{tpu_custom_call.1} parent=27 // pred_fallthru
          _
      $region28: #{tpu_custom_call.1} parent=5 // pred_fallthru
        _
      %p558 = scmp.le.s32.totalorder 2, %s32
      // Predicated region
      $region49: #{tpu_custom_call.1} parent=5 // pred_check
        %p559 = pneg %p558
      $region50: #{tpu_custom_call.1} parent=5 // pred_check_branch
        %561 = sbr.rel (%p559) target = $region52
      $region51: #{tpu_custom_call.1} parent=5 // pred_region
        %s562 = ssub.s32 %s32, 2
        // Predicated region
        $region53: #{tpu_custom_call.1} parent=51 // pred_check
          %p563 = pneg %p133
        $region54: #{tpu_custom_call.1} parent=51 // pred_check_branch
          %565 = sbr.rel (%p563) target = $region56
        $region55: #{tpu_custom_call.1} parent=51 // pred_region
          %s566 = sand.u32 %s118, 1
          %s567 = scalar_lea.sflag [#allocation12], %s566
          %s568 = sand.u32 %s118, 1
          %s569 = smul.addr %s568, 64
          %s570 = scalar_lea.vmem [#allocation15], %s569
          %571 = dma.done %s567, 1024
        $region56: #{tpu_custom_call.1} parent=51 // pred_fallthru
          _
      $region52: #{tpu_custom_call.1} parent=5 // pred_fallthru
        _
    $region6: #{tpu_custom_call.1} parent=1 // loop_footer
      %s36 = sadd.s32 1, %s32
    $region7: #{tpu_custom_call.1} parent=1 // loop_footer_branch
      %31 = sbr.rel target = $region3
    $region8: #{tpu_custom_call.1} parent=1 // loop_exit
      _
    %572 = vsyncpa [#allocation11], 1
    %s573 = scalar_lea.sflag [#allocation11], 1
    %574 = vsyncpa %s573, 1
    %575 = vsyncpa [#allocation14], 1
    %s576 = scalar_lea.sflag [#allocation14], 1
    %577 = vsyncpa %s576, 1
    %578 = vsyncpa [#allocation12], 1
    %s579 = scalar_lea.sflag [#allocation12], 1
    %580 = vsyncpa %s579, 1

</llo_original>
